<compile_context>
chip_gen: v7x
topology: tpu7x:2x2x1
jax: 0.10.0
libtpu: 0.0.40
codegen_flags: <defaults>
</compile_context>

<pallas_src>
import functools
import math

import jax
import jax.numpy as jnp
from jax.experimental import pallas as pl
from jax.experimental.pallas import tpu as pltpu


def _gcn_kernel(*refs, has_bias):
    if has_bias:
        x_ref, adj_ref, wt_ref, b_ref, out_ref, support_ref = refs
    else:
        x_ref, adj_ref, wt_ref, out_ref, support_ref = refs
        b_ref = None

    r = pl.program_id(1)       # adj row-tile index (innermost, "arbitrary")
    bt = out_ref.shape[0]      # static batch tile

    # support^T[b] = W[b]^T @ x[b] -> (C_out, N_pad); computed once per batch
    # block and cached in VMEM scratch for all row tiles of that batch block.
    @pl.when(r == 0)
    def _():
        for b in range(bt):    # small static unroll (bt <= 8)
            sup = jnp.dot(wt_ref[b], x_ref[b],
                          preferred_element_type=jnp.float32)
            support_ref[b] = sup.astype(support_ref.dtype)

    # out^T[b, :, m] = sum_n adj[b, m, n] * support^T[b, :, n]
    # Both operands contract along their lane (last) dim -> no transposes.
    for b in range(bt):
        acc = jax.lax.dot_general(
            support_ref[b], adj_ref[b],
            dimension_numbers=(((1,), (1,)), ((), ())),
            preferred_element_type=jnp.float32,
        )                                   # (C_out, row_tile) f32
        if b_ref is not None:
            acc = acc + b_ref[...]          # (C_out, 1) f32 bias, lane-broadcast
        out_ref[b] = acc.astype(out_ref.dtype)


def graph_convolution(x, adj, weight, bias=None, *,
                      compute_dtype=jnp.bfloat16,
                      row_tile=128, batch_tile=None):
    """out = ((adj @ (x^T @ W)) + b)^T.

    x: (B, C_in, N), adj: (B, N, N), weight: (B, C_in, C_out),
    bias: (C_out,) or None.  Returns (B, C_out, N) in x.dtype.
    """
    B, c_in, n = x.shape
    c_out = weight.shape[-1]
    assert adj.shape == (B, n, n), adj.shape
    assert weight.shape == (B, c_in, c_out), weight.shape
    assert row_tile % 128 == 0, "row_tile must be a multiple of 128 (lane-dense)"

    out_dtype = x.dtype
    if batch_tile is None:
        batch_tile = math.gcd(B, 8)
    assert B % batch_tile == 0

    # Pad the node dim so the output last dim is lane-dense and adj tiles evenly.
    n_pad = row_tile * pl.cdiv(n, row_tile)
    if n_pad != n:
        x = jnp.pad(x, ((0, 0), (0, 0), (0, n_pad - n)))
        adj = jnp.pad(adj, ((0, 0), (0, n_pad - n), (0, n_pad - n)))

    # bf16 operands (MXU-native), f32 accumulation inside the kernel.
    xc = x.astype(compute_dtype)
    adjc = adj.astype(compute_dtype)
    # Pre-transpose W -> (B, C_out, C_in) outside the kernel (tiny, XLA) so the
    # kernel's first matmul is a plain (C_out,C_in)@(C_in,N_pad).
    wtc = jnp.transpose(weight, (0, 2, 1)).astype(compute_dtype)

    has_bias = bias is not None
    inputs = [xc, adjc, wtc]
    in_specs = [
        pl.BlockSpec((batch_tile, c_in, n_pad), lambda b, r: (b, 0, 0)),
        pl.BlockSpec((batch_tile, row_tile, n_pad), lambda b, r: (b, r, 0)),
        pl.BlockSpec((batch_tile, c_out, c_in), lambda b, r: (b, 0, 0)),
    ]
    if has_bias:
        # f32 bias as (C_out, 1): added in f32 before the final cast; invariant
        # block across the whole grid.
        inputs.append(jnp.asarray(bias, jnp.float32).reshape(c_out, 1))
        in_specs.append(pl.BlockSpec((c_out, 1), lambda b, r: (0, 0)))

    grid = (B // batch_tile, n_pad // row_tile)

    # Rough VMEM budget: double-buffered blocks + the per-batch support scratch.
    cbytes = jnp.dtype(compute_dtype).itemsize
    obytes = jnp.dtype(out_dtype).itemsize
    est = (2 * (batch_tile * c_in * n_pad * cbytes
                + batch_tile * row_tile * n_pad * cbytes
                + batch_tile * c_out * c_in * cbytes
                + c_out * 4
                + batch_tile * c_out * row_tile * obytes)
           + batch_tile * c_out * n_pad * cbytes)
    vmem_limit = int(min(64 * 1024 * 1024, max(32 * 1024 * 1024, 2 * est)))

    out = pl.pallas_call(
        functools.partial(_gcn_kernel, has_bias=has_bias),
        out_shape=jax.ShapeDtypeStruct((B, c_out, n_pad), out_dtype),
        grid_spec=pltpu.PrefetchScalarGridSpec(
            num_scalar_prefetch=0,
            grid=grid,
            in_specs=in_specs,
            out_specs=pl.BlockSpec((batch_tile, c_out, row_tile),
                                   lambda b, r: (b, 0, r)),
            scratch_shapes=[pltpu.VMEM((batch_tile, c_out, n_pad), compute_dtype)],
        ),
        compiler_params=pltpu.CompilerParams(
            # Batch axis is megacore-parallel; the row-tile axis must stay
            # sequential because the support scratch is filled at r == 0.
            dimension_semantics=("parallel", "arbitrary"),
            vmem_limit_bytes=vmem_limit,
        ),
    )(*inputs)

    return out[..., :n]


def xavier_normal_init(key, shape, gain=0.02):
    """Match torch.nn.init.xavier_normal_ for a 3D (B, in, out) tensor."""
    receptive = 1
    for d in shape[2:]:
        receptive *= d
    fan_in = shape[1] * receptive
    fan_out = shape[0] * receptive
    std = gain * math.sqrt(2.0 / (fan_in + fan_out))
    return std * jax.random.normal(key, shape, dtype=jnp.float32)


if __name__ == "__main__":
    key = jax.random.PRNGKey(0)
    k_x, k_adj, k_w = jax.random.split(key, 3)

    B, C_in, C_out, N = 2, 8, 32, 16

    x = jax.random.normal(k_x, (B, C_in, N), dtype=jnp.float32)
    adj = jax.random.uniform(k_adj, (B, N, N), dtype=jnp.float32)
    adj = adj / jnp.sum(adj, axis=-1, keepdims=True)   # row-normalized adjacency

    # The PyTorch forward re-creates weight as (B, in, out) with xavier(gain=0.02)
    # each call; we reproduce that init host-side and pass W explicitly.
    weight = xavier_normal_init(k_w, (B, C_in, C_out), gain=0.02)
    bias = jnp.zeros((C_out,), dtype=jnp.float32)

    out = graph_convolution(x, adj, weight, bias)
    out = jax.block_until_ready(out)
    assert out.shape == (B, C_out, N), out.shape
    assert out.dtype == x.dtype

    hi = jax.lax.Precision.HIGHEST
    f32 = jnp.float32

    # Reference 1: exact emulation of the kernel's bf16-operand / f32-accum math.
    xq = x.astype(jnp.bfloat16).astype(f32)
    aq = adj.astype(jnp.bfloat16).astype(f32)
    wq = weight.astype(jnp.bfloat16).astype(f32)
    sup_q = jnp.einsum("bcn,bco->bno", xq, wq, precision=hi)
    sup_q = sup_q.astype(jnp.bfloat16).astype(f32)
    ref_q = jnp.einsum("bnm,bmo->bno", aq, sup_q, precision=hi) + bias[None, None, :]
    ref_q = jnp.transpose(ref_q, (0, 2, 1))

    # Reference 2: full-f32 semantics of the PyTorch module.
    sup32 = jnp.einsum("bcn,bco->bno", x, weight, precision=hi)
    ref32 = jnp.einsum("bnm,bmo->bno", adj, sup32, precision=hi) + bias[None, None, :]
    ref32 = jnp.transpose(ref32, (0, 2, 1))

    def rel_err(a, b):
        return float(jnp.max(jnp.abs(a - b)) / (jnp.max(jnp.abs(b)) + 1e-12))

    e_q, e_32 = rel_err(out, ref_q), rel_err(out, ref32)
    assert e_q < 5e-3, e_q     # vs. bf16-emulated reference (should be ~exact)
    assert e_32 < 5e-2, e_32   # vs. full-f32 reference (bf16 rounding only)

    print("KERNEL_OK")
</pallas_src>

<mosaic_0001>
module attributes {stable_mosaic.version = 11 : i64} {
  func.func @_gcn_kernel(%arg0: i32, %arg1: i32, %arg2: memref<2x8x128xbf16, #tpu.memory_space<vmem>>, %arg3: memref<2x128x128xbf16, #tpu.memory_space<vmem>>, %arg4: memref<2x32x8xbf16, #tpu.memory_space<vmem>>, %arg5: memref<32x1xf32, #tpu.memory_space<vmem>>, %arg6: memref<2x32x128xf32, #tpu.memory_space<vmem>>, %arg7: memref<2x32x128xbf16, #tpu.memory_space<vmem>>) attributes {dimension_semantics = [#tpu.dimension_semantics<parallel>, #tpu.dimension_semantics<arbitrary>], iteration_bounds = array<i64: 1, 1>, scalar_prefetch = 0 : i64, scratch_operands = 1 : i64, tpu.core_type = #tpu.core_type<tc>, window_params = [{transform_indices = @transform_0, window_bounds = array<i64: 2, 8, 128>}, {transform_indices = @transform_1, window_bounds = array<i64: 2, 128, 128>}, {transform_indices = @transform_2, window_bounds = array<i64: 2, 32, 8>}, {pipeline_mode = #tpu.pipeline_mode<synchronous>, transform_indices = @transform_3, window_bounds = array<i64: 32, 1>}, {transform_indices = @transform_4, window_bounds = array<i64: 2, 32, 128>}]} {
    %c0_i32 = arith.constant 0 : i32
    %0 = arith.cmpi eq, %arg1, %c0_i32 : i32
    %1 = arith.extui %0 : i1 to i32
    %c0_i32_0 = arith.constant 0 : i32
    %2 = arith.cmpi ne, %1, %c0_i32_0 : i32
    scf.if %2 {
      %c0_22 = arith.constant 0 : index
      %c0_23 = arith.constant 0 : index
      %c0_24 = arith.constant 0 : index
      %25 = vector.load %arg4[%c0_22, %c0_23, %c0_24] : memref<2x32x8xbf16, #tpu.memory_space<vmem>>, vector<1x32x8xbf16>
      %26 = vector.shape_cast %25 : vector<1x32x8xbf16> to vector<32x8xbf16>
      %c0_25 = arith.constant 0 : index
      %c0_26 = arith.constant 0 : index
      %c0_27 = arith.constant 0 : index
      %27 = vector.load %arg2[%c0_25, %c0_26, %c0_27] : memref<2x8x128xbf16, #tpu.memory_space<vmem>>, vector<1x8x128xbf16>
      %28 = vector.shape_cast %27 : vector<1x8x128xbf16> to vector<8x128xbf16>
      %cst_28 = arith.constant dense<0.000000e+00> : vector<32x128xf32>
      %29 = tpu.matmul %26, %28, %cst_28 {dimension_numbers = #tpu.dot_dimension_numbers<[1], [0], [0], [1], [0, 0, 1, 1], [], []>} : vector<32x8xbf16>, vector<8x128xbf16>, vector<32x128xf32> -> vector<32x128xf32>
      %30 = arith.truncf %29 : vector<32x128xf32> to vector<32x128xbf16>
      %c0_29 = arith.constant 0 : index
      %c0_30 = arith.constant 0 : index
      %c0_31 = arith.constant 0 : index
      %31 = vector.load %arg7[%c0_29, %c0_30, %c0_31] : memref<2x32x128xbf16, #tpu.memory_space<vmem>>, vector<1x32x128xbf16>
      %32 = vector.shape_cast %31 : vector<1x32x128xbf16> to vector<32x128xbf16>
      %33 = vector.shape_cast %30 : vector<32x128xbf16> to vector<1x32x128xbf16>
      tpu.vector_store %arg7[%c0_29, %c0_30, %c0_31], %33 {strides = array<i32>} : memref<2x32x128xbf16, #tpu.memory_space<vmem>>, vector<1x32x128xbf16>,
      %c1_32 = arith.constant 1 : index
      %c0_33 = arith.constant 0 : index
      %c0_34 = arith.constant 0 : index
      %34 = vector.load %arg4[%c1_32, %c0_33, %c0_34] : memref<2x32x8xbf16, #tpu.memory_space<vmem>>, vector<1x32x8xbf16>
      %35 = vector.shape_cast %34 : vector<1x32x8xbf16> to vector<32x8xbf16>
      %c1_35 = arith.constant 1 : index
      %c0_36 = arith.constant 0 : index
      %c0_37 = arith.constant 0 : index
      %36 = vector.load %arg2[%c1_35, %c0_36, %c0_37] : memref<2x8x128xbf16, #tpu.memory_space<vmem>>, vector<1x8x128xbf16>
      %37 = vector.shape_cast %36 : vector<1x8x128xbf16> to vector<8x128xbf16>
      %cst_38 = arith.constant dense<0.000000e+00> : vector<32x128xf32>
      %38 = tpu.matmul %35, %37, %cst_38 {dimension_numbers = #tpu.dot_dimension_numbers<[1], [0], [0], [1], [0, 0, 1, 1], [], []>} : vector<32x8xbf16>, vector<8x128xbf16>, vector<32x128xf32> -> vector<32x128xf32>
      %39 = arith.truncf %38 : vector<32x128xf32> to vector<32x128xbf16>
      %c1_39 = arith.constant 1 : index
      %c0_40 = arith.constant 0 : index
      %c0_41 = arith.constant 0 : index
      %40 = vector.load %arg7[%c1_39, %c0_40, %c0_41] : memref<2x32x128xbf16, #tpu.memory_space<vmem>>, vector<1x32x128xbf16>
      %41 = vector.shape_cast %40 : vector<1x32x128xbf16> to vector<32x128xbf16>
      %42 = vector.shape_cast %39 : vector<32x128xbf16> to vector<1x32x128xbf16>
      tpu.vector_store %arg7[%c1_39, %c0_40, %c0_41], %42 {strides = array<i32>} : memref<2x32x128xbf16, #tpu.memory_space<vmem>>, vector<1x32x128xbf16>,
    } else {
    }
    %c0 = arith.constant 0 : index
    %c0_1 = arith.constant 0 : index
    %c0_2 = arith.constant 0 : index
    %3 = vector.load %arg7[%c0, %c0_1, %c0_2] : memref<2x32x128xbf16, #tpu.memory_space<vmem>>, vector<1x32x128xbf16>
    %4 = vector.shape_cast %3 : vector<1x32x128xbf16> to vector<32x128xbf16>
    %c0_3 = arith.constant 0 : index
    %c0_4 = arith.constant 0 : index
    %c0_5 = arith.constant 0 : index
    %5 = vector.load %arg3[%c0_3, %c0_4, %c0_5] : memref<2x128x128xbf16, #tpu.memory_space<vmem>>, vector<1x128x128xbf16>
    %6 = vector.shape_cast %5 : vector<1x128x128xbf16> to vector<128x128xbf16>
    %cst = arith.constant dense<0.000000e+00> : vector<32x128xf32>
    %7 = tpu.matmul %4, %6, %cst {dimension_numbers = #tpu.dot_dimension_numbers<[1], [1], [0], [0], [0, 0, 1, 0], [], []>} : vector<32x128xbf16>, vector<128x128xbf16>, vector<32x128xf32> -> vector<32x128xf32>
    %c0_6 = arith.constant 0 : index
    %c0_7 = arith.constant 0 : index
    %8 = vector.load %arg5[%c0_6, %c0_7] : memref<32x1xf32, #tpu.memory_space<vmem>>, vector<32x1xf32>
    %9 = vector.broadcast %8 : vector<32x1xf32> to vector<32x128xf32>
    %10 = arith.addf %7, %9 : vector<32x128xf32>
    %c0_8 = arith.constant 0 : index
    %c0_9 = arith.constant 0 : index
    %c0_10 = arith.constant 0 : index
    %11 = vector.load %arg6[%c0_8, %c0_9, %c0_10] : memref<2x32x128xf32, #tpu.memory_space<vmem>>, vector<1x32x128xf32>
    %12 = vector.shape_cast %11 : vector<1x32x128xf32> to vector<32x128xf32>
    %13 = vector.shape_cast %10 : vector<32x128xf32> to vector<1x32x128xf32>
    tpu.vector_store %arg6[%c0_8, %c0_9, %c0_10], %13 {strides = array<i32>} : memref<2x32x128xf32, #tpu.memory_space<vmem>>, vector<1x32x128xf32>,
    %c1 = arith.constant 1 : index
    %c0_11 = arith.constant 0 : index
    %c0_12 = arith.constant 0 : index
    %14 = vector.load %arg7[%c1, %c0_11, %c0_12] : memref<2x32x128xbf16, #tpu.memory_space<vmem>>, vector<1x32x128xbf16>
    %15 = vector.shape_cast %14 : vector<1x32x128xbf16> to vector<32x128xbf16>
    %c1_13 = arith.constant 1 : index
    %c0_14 = arith.constant 0 : index
    %c0_15 = arith.constant 0 : index
    %16 = vector.load %arg3[%c1_13, %c0_14, %c0_15] : memref<2x128x128xbf16, #tpu.memory_space<vmem>>, vector<1x128x128xbf16>
    %17 = vector.shape_cast %16 : vector<1x128x128xbf16> to vector<128x128xbf16>
    %cst_16 = arith.constant dense<0.000000e+00> : vector<32x128xf32>
    %18 = tpu.matmul %15, %17, %cst_16 {dimension_numbers = #tpu.dot_dimension_numbers<[1], [1], [0], [0], [0, 0, 1, 0], [], []>} : vector<32x128xbf16>, vector<128x128xbf16>, vector<32x128xf32> -> vector<32x128xf32>
    %c0_17 = arith.constant 0 : index
    %c0_18 = arith.constant 0 : index
    %19 = vector.load %arg5[%c0_17, %c0_18] : memref<32x1xf32, #tpu.memory_space<vmem>>, vector<32x1xf32>
    %20 = vector.broadcast %19 : vector<32x1xf32> to vector<32x128xf32>
    %21 = arith.addf %18, %20 : vector<32x128xf32>
    %c1_19 = arith.constant 1 : index
    %c0_20 = arith.constant 0 : index
    %c0_21 = arith.constant 0 : index
    %22 = vector.load %arg6[%c1_19, %c0_20, %c0_21] : memref<2x32x128xf32, #tpu.memory_space<vmem>>, vector<1x32x128xf32>
    %23 = vector.shape_cast %22 : vector<1x32x128xf32> to vector<32x128xf32>
    %24 = vector.shape_cast %21 : vector<32x128xf32> to vector<1x32x128xf32>
    tpu.vector_store %arg6[%c1_19, %c0_20, %c0_21], %24 {strides = array<i32>} : memref<2x32x128xf32, #tpu.memory_space<vmem>>, vector<1x32x128xf32>,
    return
  }
  func.func @transform_0(%arg0: i32, %arg1: i32) -> (i32, i32, i32) {
    %c0_i32 = arith.constant 0 : i32
    %c0_i32_0 = arith.constant 0 : i32
    %c0_i32_1 = arith.constant 0 : i32
    return %arg0, %c0_i32, %c0_i32_0 : i32, i32, i32
  }
  func.func @transform_1(%arg0: i32, %arg1: i32) -> (i32, i32, i32) {
    %c0_i32 = arith.constant 0 : i32
    %c0_i32_0 = arith.constant 0 : i32
    return %arg0, %arg1, %c0_i32 : i32, i32, i32
  }
  func.func @transform_2(%arg0: i32, %arg1: i32) -> (i32, i32, i32) {
    %c0_i32 = arith.constant 0 : i32
    %c0_i32_0 = arith.constant 0 : i32
    %c0_i32_1 = arith.constant 0 : i32
    return %arg0, %c0_i32, %c0_i32_0 : i32, i32, i32
  }
  func.func @transform_3(%arg0: i32, %arg1: i32) -> (i32, i32) {
    %c0_i32 = arith.constant 0 : i32
    %c0_i32_0 = arith.constant 0 : i32
    %c0_i32_1 = arith.constant 0 : i32
    return %c0_i32, %c0_i32_0 : i32, i32
  }
  func.func @transform_4(%arg0: i32, %arg1: i32) -> (i32, i32, i32) {
    %c0_i32 = arith.constant 0 : i32
    %c0_i32_0 = arith.constant 0 : i32
    return %arg0, %c0_i32, %arg1 : i32, i32, i32
  }
}

</mosaic_0001>

<llo_original>
// kernel: tpu_custom_call.1
$region0: #{tpu_custom_call.1}
  #allocation0 [shape = 'u32[]', space=smem, size = 0x4, offset = 0x4, fixed_abs, tag = 'smem constant byte address 0x4 - core index']
  #allocation1 [shape = 'u32[144,128]{1,0:T(1,128)}', space=vmem, size = 0x12000, scoped, tag = 'internal scratch']
  #allocation2 [shape = 'bf16[2,32,128]{2,1,0:T(16,128)(2,1)}', space=vmem, size = 0x4000, scoped, tag = 'scratch operand']
  %s0 = inlined_call_operand.vmem [shape: bf16[2,8,128], index: 0, kind: input, shape index: {}]
  %s1 = inlined_call_operand.hbm [shape: bf16[2,128,128], index: 1, kind: input, shape index: {}]
  %s2 = inlined_call_operand.vmem [shape: bf16[2,32,8], index: 2, kind: input, shape index: {}]
  %s3 = inlined_call_operand.vmem [shape: f32[32,1], index: 3, kind: input, shape index: {}]
  %s4 = inlined_call_operand.hbm [shape: f32[2,32,128], index: 4, kind: output, shape index: {}]
  %s5 = sld [smem:[#allocation0]]
  $region34: #{tpu_custom_call.1} parent=0
    _
  %s7 = ssub.s32 1, %s5
  %s8 = scalar_select 0, %s7, %s5
  $region1: #{tpu_custom_call.1} parent=0
    #allocation3 [shape = 'u8[65536]{0}', space=vmem, size = 0x10000, scoped, tag = 'input window, operand 1, single buffered']
    #allocation4 [shape = 's32[1]{0}', space=sflag, size = 0x4, scoped, tag = 'scoped memory for tpu_custom_call.1']
    #allocation5 [shape = 's32[1]{0}', space=sflag, size = 0x4, scoped, tag = 'scoped memory for tpu_custom_call.1']
    #allocation6 [shape = 'u8[32768]{0}', space=vmem, size = 0x8000, scoped, tag = 'output window, operand 0, single buffered']
    %9 = vsyncpa [#allocation4], 0
    %10 = vsyncpa [#allocation5], 0
    // Predicated region
    $region2: #{tpu_custom_call.1} parent=1 // pred_check
      _
    $region3: #{tpu_custom_call.1} parent=1 // pred_check_branch
      %12 = sbr.rel (0) target = $region5
    $region4: #{tpu_custom_call.1} parent=1 // pred_region
      _
    $region5: #{tpu_custom_call.1} parent=1 // pred_fallthru
      _
    // Predicated region
    $region6: #{tpu_custom_call.1} parent=1 // pred_check
      _
    $region7: #{tpu_custom_call.1} parent=1 // pred_check_branch
      %14 = sbr.rel (0) target = $region9
    $region8: #{tpu_custom_call.1} parent=1 // pred_region
      %s16 = ssub.s32 2048, 2048
      %17 = vsyncadd [#allocation4], %s16
      %s18 = sshll.u32 [#allocation3], 4
      %s19 = int_to_ptr.vmem [resolvable:$true] %s18
      %24 = dma.hbm_to_vmem [thread:$0]  %s1, 2048, %s19, [#allocation4], 64, 64, 4
    $region9: #{tpu_custom_call.1} parent=1 // pred_fallthru
      _
    // Predicated region
    $region10: #{tpu_custom_call.1} parent=1 // pred_check
      _
    $region11: #{tpu_custom_call.1} parent=1 // pred_check_branch
      %26 = sbr.rel (0) target = $region13
    $region12: #{tpu_custom_call.1} parent=1 // pred_region
      _
    $region13: #{tpu_custom_call.1} parent=1 // pred_fallthru
      _
    // Predicated region
    $region14: #{tpu_custom_call.1} parent=1 // pred_check
      _
    $region15: #{tpu_custom_call.1} parent=1 // pred_check_branch
      %28 = sbr.rel (0) target = $region17
    $region16: #{tpu_custom_call.1} parent=1 // pred_region
      _
    $region17: #{tpu_custom_call.1} parent=1 // pred_fallthru
      _
    // Predicated region
    $region18: #{tpu_custom_call.1} parent=1 // pred_check
      _
    $region19: #{tpu_custom_call.1} parent=1 // pred_check_branch
      %30 = sbr.rel (0) target = $region21
    $region20: #{tpu_custom_call.1} parent=1 // pred_region
      %31 = dma.done [#allocation4], 2048
    $region21: #{tpu_custom_call.1} parent=1 // pred_fallthru
      _
    %p33 = scmp.eq.s32.totalorder 0, 0
    // Predicated region
    $region22: #{tpu_custom_call.1} parent=1 // pred_check
      %p34 = pneg %p33
    $region23: #{tpu_custom_call.1} parent=1 // pred_check_branch
      %36 = sbr.rel (%p34) target = $region25
    $region24: #{tpu_custom_call.1} parent=1 // pred_region
      %v37 = vld [vmem:[%s2] sm:$0xf]
      %v38 = vld [vmem:[%s2 + $0x4] sm:$0xf]
      %v39 = vld [vmem:[%s2 + $0x8] sm:$0xf]
      %v40 = vld [vmem:[%s2 + $0xc] sm:$0xf]
      %v41 = vld [vmem:[%s0] sm:$0xf]
      %v46 = vunpack.c.l.b16 %v37
      %v47 = vunpack.c.l.b16 %v38
      %v48 = vunpack.c.l.b16 %v39
      %v49 = vunpack.c.l.b16 %v40
      %v50 = vpack.c.b16 %v47, %v46
      %v51 = vpack.c.b16 %v49, %v48
      %vm52 = vcmask 64512
      %v54 = vsel %vm52, %v50, 0
      %v57 = vsel %vm52, %v51, 0
      %vm59 = vcmask 1043456
      %v61 = vsel %vm59, %v41, 0
      %63 = vmatprep.subr.bf16.mxu0 0
      %64 = vmatpush1.bf16.msra.mxu0 %v61
      %65 = vmatprep.subr.bf16.mxu0 0
      %66 = vmatpush1.bf16.msra.mxu0 0
      %67 = vmatprep.subr.bf16.mxu0 0
      %68 = vmatpush1.bf16.msra.mxu0 0
      %69 = vmatprep.subr.bf16.mxu0 0
      %70 = vmatpush1.bf16.msra.mxu0 0
      %71 = vmatprep.subr.bf16.mxu0 0
      %72 = vmatpush1.bf16.msra.mxu0 0
      %73 = vmatprep.subr.bf16.mxu0 0
      %74 = vmatpush1.bf16.msra.mxu0 0
      %75 = vmatprep.subr.bf16.mxu0 0
      %76 = vmatpush1.bf16.msra.mxu0 0
      %77 = vmatprep.subr.bf16.mxu0 0
      %78 = vmatpush1.bf16.msra.mxu0 0
      %79 = vmatprep.subr.bf16.mxu0 0
      %80 = vmatpush1.bf16.msra.mxu0 0
      %81 = vmatprep.subr.bf16.mxu0 0
      %82 = vmatpush1.bf16.msra.mxu0 0
      %83 = vmatprep.subr.bf16.mxu0 0
      %84 = vmatpush1.bf16.msra.mxu0 0
      %85 = vmatprep.subr.bf16.mxu0 0
      %86 = vmatpush1.bf16.msra.mxu0 0
      %87 = vmatprep.subr.bf16.mxu0 0
      %88 = vmatpush1.bf16.msra.mxu0 0
      %89 = vmatprep.subr.bf16.mxu0 0
      %90 = vmatpush1.bf16.msra.mxu0 0
      %91 = vmatprep.subr.bf16.mxu0 0
      %92 = vmatpush1.bf16.msra.mxu0 0
      %93 = vmatprep.subr.bf16.mxu0 0
      %94 = vmatpush1.bf16.msra.mxu0 0
      %95 = vmatprep.mubr.bf16.mxu0 0
      %96 = vmatmul.mubr.bf16.gmra.mrb[0].mxu0 %v54
      %v97 = vpop.f32.mrb[0].mxu0
      %v98 = vadd.f32 0.0, %v97
      %v99 = vpop.f32.mrb[0].mxu0
      %v100 = vpop.f32.mrb[0].mxu0
      %v101 = vadd.f32 0.0, %v100
      %v102 = vpop.f32.mrb[0].mxu0
      %103 = vmatprep.mubr.bf16.mxu0 0
      %104 = vmatmul.mubr.bf16.gmra.mrb[0].mxu0 %v57
      %v105 = vpop.f32.mrb[0].mxu0
      %v106 = vadd.f32 0.0, %v105
      %v107 = vpop.f32.mrb[0].mxu0
      %v108 = vpop.f32.mrb[0].mxu0
      %v109 = vadd.f32 0.0, %v108
      %v110 = vpop.f32.mrb[0].mxu0
      %111 = vdwg.mxu0
      %v112 = vpack.c.bf16 %v101, %v98
      %v113 = vpack.c.bf16 %v109, %v106
      %114 = vst [vmem:[#allocation2] sm:$0xff] %v112
      %115 = vst [vmem:[#allocation2 + $0x8] sm:$0xff] %v113
      %s116 = scalar_lea.vmem %s2, 16
      %v117 = vld [vmem:[%s116] sm:$0xf]
      %v118 = vld [vmem:[%s116 + $0x4] sm:$0xf]
      %v119 = vld [vmem:[%s116 + $0x8] sm:$0xf]
      %v120 = vld [vmem:[%s116 + $0xc] sm:$0xf]
      %s121 = scalar_lea.vmem %s0, 4
      %v122 = vld [vmem:[%s121] sm:$0xf]
      %v127 = vunpack.c.l.b16 %v117
      %v128 = vunpack.c.l.b16 %v118
      %v129 = vunpack.c.l.b16 %v119
      %v130 = vunpack.c.l.b16 %v120
      %v131 = vpack.c.b16 %v128, %v127
      %v132 = vpack.c.b16 %v130, %v129
      %v134 = vsel %vm52, %v131, 0
      %v137 = vsel %vm52, %v132, 0
      %v140 = vsel %vm59, %v122, 0
      %142 = vmatprep.subr.bf16.mxu0 0
      %143 = vmatpush1.bf16.msra.mxu0 %v140
      %144 = vmatprep.subr.bf16.mxu0 0
      %145 = vmatpush1.bf16.msra.mxu0 0
      %146 = vmatprep.subr.bf16.mxu0 0
      %147 = vmatpush1.bf16.msra.mxu0 0
      %148 = vmatprep.subr.bf16.mxu0 0
      %149 = vmatpush1.bf16.msra.mxu0 0
      %150 = vmatprep.subr.bf16.mxu0 0
      %151 = vmatpush1.bf16.msra.mxu0 0
      %152 = vmatprep.subr.bf16.mxu0 0
      %153 = vmatpush1.bf16.msra.mxu0 0
      %154 = vmatprep.subr.bf16.mxu0 0
      %155 = vmatpush1.bf16.msra.mxu0 0
      %156 = vmatprep.subr.bf16.mxu0 0
      %157 = vmatpush1.bf16.msra.mxu0 0
      %158 = vmatprep.subr.bf16.mxu0 0
      %159 = vmatpush1.bf16.msra.mxu0 0
      %160 = vmatprep.subr.bf16.mxu0 0
      %161 = vmatpush1.bf16.msra.mxu0 0
      %162 = vmatprep.subr.bf16.mxu0 0
      %163 = vmatpush1.bf16.msra.mxu0 0
      %164 = vmatprep.subr.bf16.mxu0 0
      %165 = vmatpush1.bf16.msra.mxu0 0
      %166 = vmatprep.subr.bf16.mxu0 0
      %167 = vmatpush1.bf16.msra.mxu0 0
      %168 = vmatprep.subr.bf16.mxu0 0
      %169 = vmatpush1.bf16.msra.mxu0 0
      %170 = vmatprep.subr.bf16.mxu0 0
      %171 = vmatpush1.bf16.msra.mxu0 0
      %172 = vmatprep.subr.bf16.mxu0 0
      %173 = vmatpush1.bf16.msra.mxu0 0
      %174 = vmatprep.mubr.bf16.mxu0 0
      %175 = vmatmul.mubr.bf16.gmra.mrb[0].mxu0 %v134
      %v176 = vpop.f32.mrb[0].mxu0
      %v177 = vadd.f32 0.0, %v176
      %v178 = vpop.f32.mrb[0].mxu0
      %v179 = vpop.f32.mrb[0].mxu0
      %v180 = vadd.f32 0.0, %v179
      %v181 = vpop.f32.mrb[0].mxu0
      %182 = vmatprep.mubr.bf16.mxu0 0
      %183 = vmatmul.mubr.bf16.gmra.mrb[0].mxu0 %v137
      %v184 = vpop.f32.mrb[0].mxu0
      %v185 = vadd.f32 0.0, %v184
      %v186 = vpop.f32.mrb[0].mxu0
      %v187 = vpop.f32.mrb[0].mxu0
      %v188 = vadd.f32 0.0, %v187
      %v189 = vpop.f32.mrb[0].mxu0
      %190 = vdwg.mxu0
      %v191 = vpack.c.bf16 %v180, %v177
      %v192 = vpack.c.bf16 %v188, %v185
      %s193 = scalar_lea.vmem [#allocation2], 16
      %194 = vst [vmem:[%s193] sm:$0xff] %v191
      %195 = vst [vmem:[%s193 + $0x8] sm:$0xff] %v192
    $region25: #{tpu_custom_call.1} parent=1 // pred_fallthru
      _
    %v196 = vld [vmem:[#allocation2] sm:$0xff]
    %v197 = vld [vmem:[#allocation2 + $0x8] sm:$0xff]
    %v198 = vld [vmem:[#allocation3] sm:$0xf]
    %v199 = vld [vmem:[#allocation3 + $0x4] sm:$0xf]
    %v200 = vld [vmem:[#allocation3 + $0x8] sm:$0xf]
    %v201 = vld [vmem:[#allocation3 + $0xc] sm:$0xf]
    %v202 = vld [vmem:[#allocation3 + $0x10] sm:$0xf]
    %v203 = vld [vmem:[#allocation3 + $0x14] sm:$0xf]
    %v204 = vld [vmem:[#allocation3 + $0x18] sm:$0xf]
    %v205 = vld [vmem:[#allocation3 + $0x1c] sm:$0xf]
    %v206 = vld [vmem:[#allocation3 + $0x20] sm:$0xf]
    %v207 = vld [vmem:[#allocation3 + $0x24] sm:$0xf]
    %v208 = vld [vmem:[#allocation3 + $0x28] sm:$0xf]
    %v209 = vld [vmem:[#allocation3 + $0x2c] sm:$0xf]
    %v210 = vld [vmem:[#allocation3 + $0x30] sm:$0xf]
    %v211 = vld [vmem:[#allocation3 + $0x34] sm:$0xf]
    %v212 = vld [vmem:[#allocation3 + $0x38] sm:$0xf]
    %v213 = vld [vmem:[#allocation3 + $0x3c] sm:$0xf]
    %v214 = vld [vmem:[%s3] sm:$0xff]
    %v215 = vld [vmem:[%s3 + $0x8] sm:$0xff]
    %v216 = vld [vmem:[%s3 + $0x10] sm:$0xff]
    %v217 = vld [vmem:[%s3 + $0x18] sm:$0xff]
    %219 = vset.pattern.permute.xlu0 0
    %220 = vperm.xlu0 %219, %v214
    %v221 = vpop.permute.xlu0 %220
    %224 = vset.pattern.permute.xlu0 0
    %225 = vperm.xlu0 %224, %v215
    %v226 = vpop.permute.xlu0 %225
    %229 = vset.pattern.permute.xlu0 0
    %230 = vperm.xlu0 %229, %v216
    %v231 = vpop.permute.xlu0 %230
    %234 = vset.pattern.permute.xlu0 0
    %235 = vperm.xlu0 %234, %v217
    %v236 = vpop.permute.xlu0 %235
    %v254 = vunpack.c.l.b16 %v198
    %v255 = vunpack.c.l.b16 %v199
    %v256 = vunpack.c.l.b16 %v200
    %v257 = vunpack.c.l.b16 %v201
    %v258 = vunpack.c.l.b16 %v202
    %v259 = vunpack.c.l.b16 %v203
    %v260 = vunpack.c.l.b16 %v204
    %v261 = vunpack.c.l.b16 %v205
    %v262 = vunpack.c.l.b16 %v206
    %v263 = vunpack.c.l.b16 %v207
    %v264 = vunpack.c.l.b16 %v208
    %v265 = vunpack.c.l.b16 %v209
    %v266 = vunpack.c.l.b16 %v210
    %v267 = vunpack.c.l.b16 %v211
    %v268 = vunpack.c.l.b16 %v212
    %v269 = vunpack.c.l.b16 %v213
    %v270 = vpack.c.b16 %v255, %v254
    %v271 = vpack.c.b16 %v257, %v256
    %v272 = vpack.c.b16 %v259, %v258
    %v273 = vpack.c.b16 %v261, %v260
    %v274 = vpack.c.b16 %v263, %v262
    %v275 = vpack.c.b16 %v265, %v264
    %v276 = vpack.c.b16 %v267, %v266
    %v277 = vpack.c.b16 %v269, %v268
    %286 = vmatprep.subr.bf16.mxu0 0
    %287 = vmatpush1.bf16.xpose.msra.mxu0 %v270
    %288 = vmatprep.subr.bf16.mxu0 0
    %289 = vmatpush1.bf16.xpose.msra.mxu0 %v271
    %290 = vmatprep.subr.bf16.mxu0 0
    %291 = vmatpush1.bf16.xpose.msra.mxu0 %v272
    %292 = vmatprep.subr.bf16.mxu0 0
    %293 = vmatpush1.bf16.xpose.msra.mxu0 %v273
    %294 = vmatprep.subr.bf16.mxu0 0
    %295 = vmatpush1.bf16.xpose.msra.mxu0 %v274
    %296 = vmatprep.subr.bf16.mxu0 0
    %297 = vmatpush1.bf16.xpose.msra.mxu0 %v275
    %298 = vmatprep.subr.bf16.mxu0 0
    %299 = vmatpush1.bf16.xpose.msra.mxu0 %v276
    %300 = vmatprep.subr.bf16.mxu0 0
    %301 = vmatpush1.bf16.xpose.msra.mxu0 %v277
    %302 = vmatprep.subr.bf16.mxu0 0
    %303 = vmatpush1.bf16.xpose.msra.mxu0 0
    %304 = vmatprep.subr.bf16.mxu0 0
    %305 = vmatpush1.bf16.xpose.msra.mxu0 0
    %306 = vmatprep.subr.bf16.mxu0 0
    %307 = vmatpush1.bf16.xpose.msra.mxu0 0
    %308 = vmatprep.subr.bf16.mxu0 0
    %309 = vmatpush1.bf16.xpose.msra.mxu0 0
    %310 = vmatprep.subr.bf16.mxu0 0
    %311 = vmatpush1.bf16.xpose.msra.mxu0 0
    %312 = vmatprep.subr.bf16.mxu0 0
    %313 = vmatpush1.bf16.xpose.msra.mxu0 0
    %314 = vmatprep.subr.bf16.mxu0 0
    %315 = vmatpush1.bf16.xpose.msra.mxu0 0
    %316 = vmatprep.subr.bf16.mxu0 0
    %317 = vmatpush1.bf16.xpose.msra.mxu0 0
    %318 = vmatprep.mubr.bf16.mxu0 0
    %319 = vmatmul.mubr.bf16.gmra.mrb[0].mxu0 %v196
    %v320 = vpop.f32.mrb[0].mxu0
    %v321 = vadd.f32 %v221, %v320
    %v322 = vpop.f32.mrb[0].mxu0
    %v323 = vpop.f32.mrb[0].mxu0
    %v324 = vadd.f32 %v226, %v323
    %v325 = vpop.f32.mrb[0].mxu0
    %326 = vmatprep.mubr.bf16.mxu0 0
    %327 = vmatmul.mubr.bf16.gmra.mrb[0].mxu0 %v197
    %v328 = vpop.f32.mrb[0].mxu0
    %v329 = vadd.f32 %v231, %v328
    %v330 = vpop.f32.mrb[0].mxu0
    %v331 = vpop.f32.mrb[0].mxu0
    %v332 = vadd.f32 %v236, %v331
    %v333 = vpop.f32.mrb[0].mxu0
    %334 = vdwg.mxu0
    %335 = vst [vmem:[#allocation6] sm:$0xff] %v321
    %336 = vst [vmem:[#allocation6 + $0x8] sm:$0xff] %v324
    %337 = vst [vmem:[#allocation6 + $0x10] sm:$0xff] %v329
    %338 = vst [vmem:[#allocation6 + $0x18] sm:$0xff] %v332
    %s339 = scalar_lea.vmem [#allocation2], 16
    %v340 = vld [vmem:[%s339] sm:$0xff]
    %v341 = vld [vmem:[%s339 + $0x8] sm:$0xff]
    %s342 = scalar_lea.vmem [#allocation3], 64
    %v343 = vld [vmem:[%s342] sm:$0xf]
    %v344 = vld [vmem:[%s342 + $0x4] sm:$0xf]
    %v345 = vld [vmem:[%s342 + $0x8] sm:$0xf]
    %v346 = vld [vmem:[%s342 + $0xc] sm:$0xf]
    %v347 = vld [vmem:[%s342 + $0x10] sm:$0xf]
    %v348 = vld [vmem:[%s342 + $0x14] sm:$0xf]
    %v349 = vld [vmem:[%s342 + $0x18] sm:$0xf]
    %v350 = vld [vmem:[%s342 + $0x1c] sm:$0xf]
    %v351 = vld [vmem:[%s342 + $0x20] sm:$0xf]
    %v352 = vld [vmem:[%s342 + $0x24] sm:$0xf]
    %v353 = vld [vmem:[%s342 + $0x28] sm:$0xf]
    %v354 = vld [vmem:[%s342 + $0x2c] sm:$0xf]
    %v355 = vld [vmem:[%s342 + $0x30] sm:$0xf]
    %v356 = vld [vmem:[%s342 + $0x34] sm:$0xf]
    %v357 = vld [vmem:[%s342 + $0x38] sm:$0xf]
    %v358 = vld [vmem:[%s342 + $0x3c] sm:$0xf]
    %v359 = vld [vmem:[%s3] sm:$0xff]
    %v360 = vld [vmem:[%s3 + $0x8] sm:$0xff]
    %v361 = vld [vmem:[%s3 + $0x10] sm:$0xff]
    %v362 = vld [vmem:[%s3 + $0x18] sm:$0xff]
    %364 = vset.pattern.permute.xlu0 0
    %365 = vperm.xlu0 %364, %v359
    %v366 = vpop.permute.xlu0 %365
    %369 = vset.pattern.permute.xlu0 0
    %370 = vperm.xlu0 %369, %v360
    %v371 = vpop.permute.xlu0 %370
    %374 = vset.pattern.permute.xlu0 0
    %375 = vperm.xlu0 %374, %v361
    %v376 = vpop.permute.xlu0 %375
    %379 = vset.pattern.permute.xlu0 0
    %380 = vperm.xlu0 %379, %v362
    %v381 = vpop.permute.xlu0 %380
    %v399 = vunpack.c.l.b16 %v343
    %v400 = vunpack.c.l.b16 %v344
    %v401 = vunpack.c.l.b16 %v345
    %v402 = vunpack.c.l.b16 %v346
    %v403 = vunpack.c.l.b16 %v347
    %v404 = vunpack.c.l.b16 %v348
    %v405 = vunpack.c.l.b16 %v349
    %v406 = vunpack.c.l.b16 %v350
    %v407 = vunpack.c.l.b16 %v351
    %v408 = vunpack.c.l.b16 %v352
    %v409 = vunpack.c.l.b16 %v353
    %v410 = vunpack.c.l.b16 %v354
    %v411 = vunpack.c.l.b16 %v355
    %v412 = vunpack.c.l.b16 %v356
    %v413 = vunpack.c.l.b16 %v357
    %v414 = vunpack.c.l.b16 %v358
    %v415 = vpack.c.b16 %v400, %v399
    %v416 = vpack.c.b16 %v402, %v401
    %v417 = vpack.c.b16 %v404, %v403
    %v418 = vpack.c.b16 %v406, %v405
    %v419 = vpack.c.b16 %v408, %v407
    %v420 = vpack.c.b16 %v410, %v409
    %v421 = vpack.c.b16 %v412, %v411
    %v422 = vpack.c.b16 %v414, %v413
    %431 = vmatprep.subr.bf16.mxu0 0
    %432 = vmatpush1.bf16.xpose.msra.mxu0 %v415
    %433 = vmatprep.subr.bf16.mxu0 0
    %434 = vmatpush1.bf16.xpose.msra.mxu0 %v416
    %435 = vmatprep.subr.bf16.mxu0 0
    %436 = vmatpush1.bf16.xpose.msra.mxu0 %v417
    %437 = vmatprep.subr.bf16.mxu0 0
    %438 = vmatpush1.bf16.xpose.msra.mxu0 %v418
    %439 = vmatprep.subr.bf16.mxu0 0
    %440 = vmatpush1.bf16.xpose.msra.mxu0 %v419
    %441 = vmatprep.subr.bf16.mxu0 0
    %442 = vmatpush1.bf16.xpose.msra.mxu0 %v420
    %443 = vmatprep.subr.bf16.mxu0 0
    %444 = vmatpush1.bf16.xpose.msra.mxu0 %v421
    %445 = vmatprep.subr.bf16.mxu0 0
    %446 = vmatpush1.bf16.xpose.msra.mxu0 %v422
    %447 = vmatprep.subr.bf16.mxu0 0
    %448 = vmatpush1.bf16.xpose.msra.mxu0 0
    %449 = vmatprep.subr.bf16.mxu0 0
    %450 = vmatpush1.bf16.xpose.msra.mxu0 0
    %451 = vmatprep.subr.bf16.mxu0 0
    %452 = vmatpush1.bf16.xpose.msra.mxu0 0
    %453 = vmatprep.subr.bf16.mxu0 0
    %454 = vmatpush1.bf16.xpose.msra.mxu0 0
    %455 = vmatprep.subr.bf16.mxu0 0
    %456 = vmatpush1.bf16.xpose.msra.mxu0 0
    %457 = vmatprep.subr.bf16.mxu0 0
    %458 = vmatpush1.bf16.xpose.msra.mxu0 0
    %459 = vmatprep.subr.bf16.mxu0 0
    %460 = vmatpush1.bf16.xpose.msra.mxu0 0
    %461 = vmatprep.subr.bf16.mxu0 0
    %462 = vmatpush1.bf16.xpose.msra.mxu0 0
    %463 = vmatprep.mubr.bf16.mxu0 0
    %464 = vmatmul.mubr.bf16.gmra.mrb[0].mxu0 %v340
    %v465 = vpop.f32.mrb[0].mxu0
    %v466 = vadd.f32 %v366, %v465
    %v467 = vpop.f32.mrb[0].mxu0
    %v468 = vpop.f32.mrb[0].mxu0
    %v469 = vadd.f32 %v371, %v468
    %v470 = vpop.f32.mrb[0].mxu0
    %471 = vmatprep.mubr.bf16.mxu0 0
    %472 = vmatmul.mubr.bf16.gmra.mrb[0].mxu0 %v341
    %v473 = vpop.f32.mrb[0].mxu0
    %v474 = vadd.f32 %v376, %v473
    %v475 = vpop.f32.mrb[0].mxu0
    %v476 = vpop.f32.mrb[0].mxu0
    %v477 = vadd.f32 %v381, %v476
    %v478 = vpop.f32.mrb[0].mxu0
    %479 = vdwg.mxu0
    %s480 = scalar_lea.vmem [#allocation6], 32
    %481 = vst [vmem:[%s480] sm:$0xff] %v466
    %482 = vst [vmem:[%s480 + $0x8] sm:$0xff] %v469
    %483 = vst [vmem:[%s480 + $0x10] sm:$0xff] %v474
    %484 = vst [vmem:[%s480 + $0x18] sm:$0xff] %v477
    // Predicated region
    $region26: #{tpu_custom_call.1} parent=1 // pred_check
      _
    $region27: #{tpu_custom_call.1} parent=1 // pred_check_branch
      %486 = sbr.rel (0) target = $region29
    $region28: #{tpu_custom_call.1} parent=1 // pred_region
      %s488 = ssub.s32 1024, 1024
      %489 = vsyncadd [#allocation5], %s488
      %s490 = sshll.u32 [#allocation6], 4
      %s491 = int_to_ptr.vmem [resolvable:$true] %s490
      %496 = dma.vmem_to_hbm [thread:$0]  %s491, 1024, %s4, [#allocation5], 128, 128, 8
    $region29: #{tpu_custom_call.1} parent=1 // pred_fallthru
      _
    // Predicated region
    $region30: #{tpu_custom_call.1} parent=1 // pred_check
      _
    $region31: #{tpu_custom_call.1} parent=1 // pred_check_branch
      %498 = sbr.rel (0) target = $region33
    $region32: #{tpu_custom_call.1} parent=1 // pred_region
      %499 = dma.done [#allocation5], 1024
    $region33: #{tpu_custom_call.1} parent=1 // pred_fallthru
      _
    %500 = vsyncpa [#allocation4], 1
    %501 = vsyncpa [#allocation5], 1

</llo_original>
